<compile_context>
chip_gen: v7x
topology: tpu7x:2x2x1
jax: 0.10.0
libtpu: 0.0.40
codegen_flags: <defaults>
</compile_context>

<pallas_src>
import functools

import jax
import jax.numpy as jnp
from jax.experimental import pallas as pl
from jax.experimental.pallas import tpu as pltpu

LANES = 128
MAX_TILE_R = 2048  # (2048, 128) f32 = 1 MiB/tile; 2 inputs x 2 buffers = 4 MiB VMEM


def _focal_elementwise(x, t, alpha, gamma):
    """Per-element sigmoid focal loss in f32 (x = logits, t = targets)."""
    # One exp per element feeds both the stable-BCE log term and the sigmoid.
    e = jnp.exp(-jnp.abs(x))                   # EUP
    log_term = jnp.log1p(e)                    # EUP
    inv = 1.0 / (1.0 + e)                      # EUP (reciprocal)
    p = jnp.where(x >= 0.0, inv, e * inv)      # == sigmoid(x)

    # Numerically stable BCE-with-logits (matches F.binary_cross_entropy_with_logits).
    ce = jnp.maximum(x, 0.0) - x * t + log_term
    p_t = p * t + (1.0 - p) * (1.0 - t)
    q = 1.0 - p_t

    g = float(gamma)
    if g == 0.0:
        mod = jnp.ones_like(q)
    elif g.is_integer() and 0.0 < g <= 8.0:
        # Integer gamma (incl. the default 2.0): plain VPU multiplies, no log+exp.
        mod = q
        for _ in range(int(g) - 1):
            mod = mod * q
    else:
        mod = q ** g
    loss = ce * mod

    if alpha >= 0:
        alpha_t = alpha * t + (1.0 - alpha) * (1.0 - t)
        loss = alpha_t * loss
    return loss


def _partial_sum(v):
    # (tile_r, 128) -> (8, 128): tile-aligned regroup + vreg adds (VPU only).
    return jnp.sum(v.reshape(-1, 8, LANES), axis=0)


def _focal_sum_kernel(x_ref, t_ref, o_ref, *, alpha, gamma, n_valid, tile_r,
                      n_tiles, need_mask):
    loss = _focal_elementwise(x_ref[...].astype(jnp.float32),
                              t_ref[...].astype(jnp.float32), alpha, gamma)

    if not need_mask:
        o_ref[...] = _partial_sum(loss)
    else:
        i = pl.program_id(0)
        last = n_tiles - 1

        @pl.when(i != last)
        def _():
            o_ref[...] = _partial_sum(loss)

        @pl.when(i == last)
        def _():
            # Mask zero-padded lanes / out-of-bounds rows in the final tile only.
            rows_i = jax.lax.broadcasted_iota(jnp.int32, (tile_r, LANES), 0)
            lanes_i = jax.lax.broadcasted_iota(jnp.int32, (tile_r, LANES), 1)
            g_row = i * tile_r + rows_i
            full_rows = n_valid // LANES
            rem = n_valid % LANES
            valid = (g_row < full_rows) | ((g_row == full_rows) & (lanes_i < rem))
            o_ref[...] = _partial_sum(jnp.where(valid, loss, 0.0))


def _focal_map_kernel(x_ref, t_ref, o_ref, *, alpha, gamma):
    o_ref[...] = _focal_elementwise(x_ref[...].astype(jnp.float32),
                                    t_ref[...].astype(jnp.float32), alpha, gamma)


def _as_lane_major(a):
    """Flatten to (rows, 128). Free reshape when size % 128 == 0 (common case)."""
    if a.dtype not in (jnp.float32, jnp.bfloat16):
        a = a.astype(jnp.float32)
    flat = a.reshape(-1)
    rem = flat.size % LANES
    if rem:
        # TODO(synk): rare non-lane-aligned path still pads (one copy); could be
        # avoided by summing the <128-element tail separately in plain JAX.
        flat = jnp.pad(flat, (0, LANES - rem))
    return flat.reshape(flat.size // LANES, LANES)


def focal_loss(x, target, alpha=0.25, gamma=2.0, reduction="mean"):
    """Pallas TPU implementation of torchvision.ops.sigmoid_focal_loss."""
    if x.shape != target.shape:
        raise ValueError("x and target must have the same shape")
    if reduction not in ("mean", "sum", "none"):
        raise ValueError(f"unknown reduction {reduction!r}")

    n = int(x.size)
    x2 = _as_lane_major(x)
    t2 = _as_lane_major(target)
    rows = x2.shape[0]

    # Tall, lane-dense tiles; sublane granularity 8 for f32, 16 if any bf16 input.
    granule = 8 if (x2.dtype == jnp.float32 and t2.dtype == jnp.float32) else 16
    tile_r = min(MAX_TILE_R, ((rows + granule - 1) // granule) * granule)
    n_tiles = pl.cdiv(rows, tile_r)

    in_specs = [
        pl.BlockSpec((tile_r, LANES), lambda i: (i, 0)),
        pl.BlockSpec((tile_r, LANES), lambda i: (i, 0)),
    ]
    cparams = pltpu.CompilerParams(dimension_semantics=("parallel",))

    if reduction == "none":
        out = pl.pallas_call(
            functools.partial(_focal_map_kernel,
                              alpha=float(alpha), gamma=float(gamma)),
            out_shape=jax.ShapeDtypeStruct((rows, LANES), jnp.float32),
            grid=(n_tiles,),
            in_specs=in_specs,
            out_specs=pl.BlockSpec((tile_r, LANES), lambda i: (i, 0)),
            compiler_params=cparams,
        )(x2, t2)
        return out.reshape(-1)[:n].reshape(x.shape)

    # Padding / a partial final block only needs masking in the last tile.
    need_mask = (n % LANES != 0) or (rows % tile_r != 0)

    partials = pl.pallas_call(
        functools.partial(
            _focal_sum_kernel, alpha=float(alpha), gamma=float(gamma),
            n_valid=n, tile_r=int(tile_r), n_tiles=int(n_tiles),
            need_mask=bool(need_mask)),
        out_shape=jax.ShapeDtypeStruct((8 * n_tiles, LANES), jnp.float32),
        grid=(n_tiles,),
        in_specs=in_specs,
        out_specs=pl.BlockSpec((8, LANES), lambda i: (i, 0)),
        compiler_params=cparams,
    )(x2, t2)

    total = jnp.sum(partials)  # tiny (8*n_tiles, 128) reduce in plain JAX
    if reduction == "mean":
        total = total / jnp.float32(n)
    return total


class FocalLoss:
    """Mirror of the PyTorch nn.Module wrapper."""

    def __init__(self, alpha=0.25, gamma=2.0, reduction="mean"):
        self.alpha = alpha
        self.gamma = gamma
        self.reduction = reduction

    def __call__(self, X, target):
        return focal_loss(X, target, self.alpha, self.gamma, self.reduction)


def _focal_loss_ref(x, target, alpha=0.25, gamma=2.0, reduction="mean"):
    """Pure-JAX reference mirroring torchvision's implementation."""
    x = x.astype(jnp.float32)
    t = target.astype(jnp.float32)
    p = jax.nn.sigmoid(x)
    ce = jnp.maximum(x, 0.0) - x * t + jnp.log1p(jnp.exp(-jnp.abs(x)))
    p_t = p * t + (1.0 - p) * (1.0 - t)
    loss = ce * (1.0 - p_t) ** gamma
    if alpha >= 0:
        alpha_t = alpha * t + (1.0 - alpha) * (1.0 - t)
        loss = alpha_t * loss
    if reduction == "mean":
        return loss.mean()
    if reduction == "sum":
        return loss.sum()
    return loss


if __name__ == "__main__":
    key = jax.random.PRNGKey(0)
    kx, kt, kxb, ktb = jax.random.split(key, 4)

    # NCHW-like shape consistent with a detection head.
    shape = (2, 4, 16, 16)
    x = jax.random.normal(kx, shape, dtype=jnp.float32)
    target = (jax.random.uniform(kt, shape) > 0.5).astype(jnp.float32)

    # Module default: mean reduction.
    loss_mod = FocalLoss(alpha=0.25, gamma=2.0, reduction="mean")
    out = jax.block_until_ready(loss_mod(x, target))
    ref = _focal_loss_ref(x, target, 0.25, 2.0, "mean")
    assert jnp.allclose(out, ref, atol=1e-6, rtol=1e-5), (out, ref)

    # Sum reduction.
    out_s = jax.block_until_ready(focal_loss(x, target, 0.25, 2.0, "sum"))
    ref_s = _focal_loss_ref(x, target, 0.25, 2.0, "sum")
    assert jnp.allclose(out_s, ref_s, atol=1e-4, rtol=1e-5), (out_s, ref_s)

    # Elementwise ('none') reduction.
    out_n = jax.block_until_ready(focal_loss(x, target, 0.25, 2.0, "none"))
    ref_n = _focal_loss_ref(x, target, 0.25, 2.0, "none")
    assert out_n.shape == shape
    assert jnp.allclose(out_n, ref_n, atol=1e-6, rtol=1e-5)

    # Non-lane-aligned shape exercises the masked final-tile (pl.when) path.
    shape_b = (3, 5, 7)
    xb = jax.random.normal(kxb, shape_b, dtype=jnp.float32)
    tb = (jax.random.uniform(ktb, shape_b) > 0.5).astype(jnp.float32)
    out_b = jax.block_until_ready(focal_loss(xb, tb, 0.75, 2.0, "mean"))
    ref_b = _focal_loss_ref(xb, tb, 0.75, 2.0, "mean")
    assert jnp.allclose(out_b, ref_b, atol=1e-6, rtol=1e-5), (out_b, ref_b)

    print("KERNEL_OK")
</pallas_src>

<mosaic_0001>
module attributes {stable_mosaic.version = 11 : i64} {
  func.func @_focal_sum_kernel(%arg0: i32, %arg1: memref<16x128xf32, #tpu.memory_space<vmem>>, %arg2: memref<16x128xf32, #tpu.memory_space<vmem>>, %arg3: memref<8x128xf32, #tpu.memory_space<vmem>>) attributes {dimension_semantics = [#tpu.dimension_semantics<parallel>], iteration_bounds = array<i64: 1>, scalar_prefetch = 0 : i64, scratch_operands = 0 : i64, tpu.core_type = #tpu.core_type<tc>, window_params = [{transform_indices = @transform_0, window_bounds = array<i64: 16, 128>}, {transform_indices = @transform_1, window_bounds = array<i64: 16, 128>}, {transform_indices = @transform_2, window_bounds = array<i64: 8, 128>}]} {
    %c0 = arith.constant 0 : index
    %c0_0 = arith.constant 0 : index
    %0 = vector.load %arg1[%c0, %c0_0] : memref<16x128xf32, #tpu.memory_space<vmem>>, vector<16x128xf32>
    %c0_1 = arith.constant 0 : index
    %c0_2 = arith.constant 0 : index
    %1 = vector.load %arg2[%c0_1, %c0_2] : memref<16x128xf32, #tpu.memory_space<vmem>>, vector<16x128xf32>
    %2 = math.absf %0 : vector<16x128xf32>
    %cst = arith.constant 0.000000e+00 : f32
    %3 = vector.broadcast %cst : f32 to vector<16x128xf32>
    %4 = arith.subf %3, %2 : vector<16x128xf32>
    %5 = math.exp %4 : vector<16x128xf32>
    %6 = math.log1p %5 : vector<16x128xf32>
    %cst_3 = arith.constant 1.000000e+00 : f32
    %7 = vector.broadcast %cst_3 : f32 to vector<16x128xf32>
    %8 = arith.addf %7, %5 : vector<16x128xf32>
    %cst_4 = arith.constant 1.000000e+00 : f32
    %9 = vector.broadcast %cst_4 : f32 to vector<16x128xf32>
    %10 = arith.divf %9, %8 : vector<16x128xf32>
    %cst_5 = arith.constant 0.000000e+00 : f32
    %11 = vector.broadcast %cst_5 : f32 to vector<16x128xf32>
    %12 = arith.cmpf oge, %0, %11 : vector<16x128xf32>
    %13 = arith.mulf %5, %10 : vector<16x128xf32>
    %14 = arith.select %12, %10, %13 : vector<16x128xi1>, vector<16x128xf32>
    %cst_6 = arith.constant 0.000000e+00 : f32
    %15 = vector.broadcast %cst_6 : f32 to vector<16x128xf32>
    %16 = arith.maximumf %0, %15 : vector<16x128xf32>
    %17 = arith.mulf %0, %1 : vector<16x128xf32>
    %18 = arith.subf %16, %17 : vector<16x128xf32>
    %19 = arith.addf %18, %6 : vector<16x128xf32>
    %20 = arith.mulf %14, %1 : vector<16x128xf32>
    %cst_7 = arith.constant 1.000000e+00 : f32
    %21 = vector.broadcast %cst_7 : f32 to vector<16x128xf32>
    %22 = arith.subf %21, %14 : vector<16x128xf32>
    %cst_8 = arith.constant 1.000000e+00 : f32
    %23 = vector.broadcast %cst_8 : f32 to vector<16x128xf32>
    %24 = arith.subf %23, %1 : vector<16x128xf32>
    %25 = arith.mulf %22, %24 : vector<16x128xf32>
    %26 = arith.addf %20, %25 : vector<16x128xf32>
    %cst_9 = arith.constant 1.000000e+00 : f32
    %27 = vector.broadcast %cst_9 : f32 to vector<16x128xf32>
    %28 = arith.subf %27, %26 : vector<16x128xf32>
    %29 = arith.mulf %28, %28 : vector<16x128xf32>
    %30 = arith.mulf %19, %29 : vector<16x128xf32>
    %cst_10 = arith.constant 2.500000e-01 : f32
    %31 = vector.broadcast %cst_10 : f32 to vector<16x128xf32>
    %32 = arith.mulf %31, %1 : vector<16x128xf32>
    %cst_11 = arith.constant 1.000000e+00 : f32
    %33 = vector.broadcast %cst_11 : f32 to vector<16x128xf32>
    %34 = arith.subf %33, %1 : vector<16x128xf32>
    %cst_12 = arith.constant 7.500000e-01 : f32
    %35 = vector.broadcast %cst_12 : f32 to vector<16x128xf32>
    %36 = arith.mulf %35, %34 : vector<16x128xf32>
    %37 = arith.addf %32, %36 : vector<16x128xf32>
    %38 = arith.mulf %37, %30 : vector<16x128xf32>
    %39 = vector.shape_cast %38 : vector<16x128xf32> to vector<2x8x128xf32>
    %cst_13 = arith.constant dense<0.000000e+00> : vector<8x128xf32>
    %40 = vector.multi_reduction <add>, %39, %cst_13 [0] : vector<2x8x128xf32> to vector<8x128xf32>
    %c0_14 = arith.constant 0 : index
    %c0_15 = arith.constant 0 : index
    %41 = vector.load %arg3[%c0_14, %c0_15] : memref<8x128xf32, #tpu.memory_space<vmem>>, vector<8x128xf32>
    tpu.vector_store %arg3[%c0_14, %c0_15], %40 {strides = array<i32>} : memref<8x128xf32, #tpu.memory_space<vmem>>, vector<8x128xf32>,
    return
  }
  func.func @transform_0(%arg0: i32) -> (i32, i32) {
    %c0_i32 = arith.constant 0 : i32
    %c0_i32_0 = arith.constant 0 : i32
    return %arg0, %c0_i32 : i32, i32
  }
  func.func @transform_1(%arg0: i32) -> (i32, i32) {
    %c0_i32 = arith.constant 0 : i32
    %c0_i32_0 = arith.constant 0 : i32
    return %arg0, %c0_i32 : i32, i32
  }
  func.func @transform_2(%arg0: i32) -> (i32, i32) {
    %c0_i32 = arith.constant 0 : i32
    %c0_i32_0 = arith.constant 0 : i32
    return %arg0, %c0_i32 : i32, i32
  }
}

</mosaic_0001>

<llo_original>
// kernel: tpu_custom_call.1
$region0: #{tpu_custom_call.1}
  #allocation0 [shape = 'u32[]', space=smem, size = 0x4, offset = 0x4, fixed_abs, tag = 'smem constant byte address 0x4 - core index']
  #allocation1 [shape = 'u32[144,128]{1,0:T(1,128)}', space=vmem, size = 0x12000, scoped, tag = 'internal scratch']
  %s0 = inlined_call_operand.hbm [shape: f32[16,128], index: 0, kind: input, shape index: {}]
  %s1 = inlined_call_operand.hbm [shape: f32[16,128], index: 1, kind: input, shape index: {}]
  %s2 = inlined_call_operand.hbm [shape: f32[8,128], index: 2, kind: output, shape index: {}]
  %s3 = sld [smem:[#allocation0]]
  $region26: #{tpu_custom_call.1} parent=0
    _
  %s5 = ssub.s32 1, %s3
  %s6 = scalar_select 0, %s5, %s3
  $region1: #{tpu_custom_call.1} parent=0
    #allocation2 [shape = 'u8[8192]{0}', space=vmem, size = 0x2000, scoped, tag = 'input window, operand 0, single buffered']
    #allocation3 [shape = 's32[1]{0}', space=sflag, size = 0x4, scoped, tag = 'scoped memory for tpu_custom_call.1']
    #allocation4 [shape = 's32[1]{0}', space=sflag, size = 0x4, scoped, tag = 'scoped memory for tpu_custom_call.1']
    #allocation5 [shape = 'u8[8192]{0}', space=vmem, size = 0x2000, scoped, tag = 'input window, operand 1, single buffered']
    #allocation6 [shape = 's32[1]{0}', space=sflag, size = 0x4, scoped, tag = 'scoped memory for tpu_custom_call.1']
    #allocation7 [shape = 'u8[4096]{0}', space=vmem, size = 0x1000, scoped, tag = 'output window, operand 0, single buffered']
    %7 = vsyncpa [#allocation3], 0
    %8 = vsyncpa [#allocation6], 0
    %9 = vsyncpa [#allocation4], 0
    // Predicated region
    $region2: #{tpu_custom_call.1} parent=1 // pred_check
      _
    $region3: #{tpu_custom_call.1} parent=1 // pred_check_branch
      %11 = sbr.rel (0) target = $region5
    $region4: #{tpu_custom_call.1} parent=1 // pred_region
      %s13 = ssub.s32 256, 256
      %14 = vsyncadd [#allocation3], %s13
      %s15 = sshll.u32 [#allocation2], 4
      %s16 = int_to_ptr.vmem [resolvable:$true] %s15
      %21 = dma.hbm_to_vmem [thread:$0]  %s0, 256, %s16, [#allocation3], 128, 128, 8
    $region5: #{tpu_custom_call.1} parent=1 // pred_fallthru
      _
    // Predicated region
    $region6: #{tpu_custom_call.1} parent=1 // pred_check
      _
    $region7: #{tpu_custom_call.1} parent=1 // pred_check_branch
      %23 = sbr.rel (0) target = $region9
    $region8: #{tpu_custom_call.1} parent=1 // pred_region
      %s25 = ssub.s32 256, 256
      %26 = vsyncadd [#allocation6], %s25
      %s27 = sshll.u32 [#allocation5], 4
      %s28 = int_to_ptr.vmem [resolvable:$true] %s27
      %33 = dma.hbm_to_vmem [thread:$0]  %s1, 256, %s28, [#allocation6], 128, 128, 8
    $region9: #{tpu_custom_call.1} parent=1 // pred_fallthru
      _
    // Predicated region
    $region10: #{tpu_custom_call.1} parent=1 // pred_check
      _
    $region11: #{tpu_custom_call.1} parent=1 // pred_check_branch
      %35 = sbr.rel (0) target = $region13
    $region12: #{tpu_custom_call.1} parent=1 // pred_region
      %36 = dma.done [#allocation3], 256
    $region13: #{tpu_custom_call.1} parent=1 // pred_fallthru
      _
    // Predicated region
    $region14: #{tpu_custom_call.1} parent=1 // pred_check
      _
    $region15: #{tpu_custom_call.1} parent=1 // pred_check_branch
      %38 = sbr.rel (0) target = $region17
    $region16: #{tpu_custom_call.1} parent=1 // pred_region
      %39 = dma.done [#allocation6], 256
    $region17: #{tpu_custom_call.1} parent=1 // pred_fallthru
      _
    %v40 = vld [vmem:[#allocation2] sm:$0xff]
    %v41 = vld [vmem:[#allocation2 + $0x8] sm:$0xff]
    %v42 = vld [vmem:[#allocation5] sm:$0xff]
    %v43 = vld [vmem:[#allocation5 + $0x8] sm:$0xff]
    %v44 = vand.u32 2147483647, %v40
    %v45 = vand.u32 2147483647, %v41
    %v46 = vsub.f32 0.0, %v44
    %v47 = vsub.f32 0.0, %v45
    %v48 = vmul.f32 %v46, 1.442695
    %v49 = vpow.pop %v48
    %v50 = vmul.f32 %v47, 1.442695
    %v51 = vpow.pop %v50
    %v52 = vadd.f32 %v49, 1.0
    %v53 = vlog2.pop %v52
    %v54 = vmul.f32 %v53, 0.6931472
    %v55 = vmul.f32 -0.5, %v49
    %v56 = vadd.f32 %v55, 1.0
    %v57 = vmul.f32 %v56, %v49
    %v58 = vand.u32 2147483647, %v49
    %vm59 = vcmp.lt.f32.partialorder %v58, 0.0004427343
    %v60 = vsel %vm59, %v57, %v54
    %v61 = vadd.f32 %v51, 1.0
    %v62 = vlog2.pop %v61
    %v63 = vmul.f32 %v62, 0.6931472
    %v64 = vmul.f32 -0.5, %v51
    %v65 = vadd.f32 %v64, 1.0
    %v66 = vmul.f32 %v65, %v51
    %v67 = vand.u32 2147483647, %v51
    %vm68 = vcmp.lt.f32.partialorder %v67, 0.0004427343
    %v69 = vsel %vm68, %v66, %v63
    %v70 = vadd.f32 %v49, 1.0
    %v71 = vadd.f32 %v51, 1.0
    %v72 = vrcp.pop %v70
    %v73 = vmul.f32 1.0, %v72
    %v74 = vrcp.pop %v71
    %v75 = vmul.f32 1.0, %v74
    %vm76 = vcmp.ge.f32.partialorder %v40, 0.0
    %vm77 = vcmp.ge.f32.partialorder %v41, 0.0
    %v78 = vmul.f32 %v49, %v73
    %v79 = vmul.f32 %v51, %v75
    %v80 = vsel %vm76, %v73, %v78
    %v81 = vsel %vm77, %v75, %v79
    %v82 = vmax.f32 %v40, 0.0
    %v83 = vmax.f32 %v41, 0.0
    %v84 = vmul.f32 %v40, %v42
    %v85 = vmul.f32 %v41, %v43
    %v86 = vsub.f32 %v82, %v84
    %v87 = vsub.f32 %v83, %v85
    %v88 = vadd.f32 %v86, %v60
    %v89 = vadd.f32 %v87, %v69
    %v90 = vmul.f32 %v80, %v42
    %v91 = vmul.f32 %v81, %v43
    %v92 = vsub.f32 1.0, %v80
    %v93 = vsub.f32 1.0, %v81
    %v94 = vsub.f32 1.0, %v42
    %v95 = vsub.f32 1.0, %v43
    %v96 = vmul.f32 %v92, %v94
    %v97 = vmul.f32 %v93, %v95
    %v98 = vadd.f32 %v90, %v96
    %v99 = vadd.f32 %v91, %v97
    %v100 = vsub.f32 1.0, %v98
    %v101 = vsub.f32 1.0, %v99
    %v102 = vmul.f32 %v100, %v100
    %v103 = vmul.f32 %v101, %v101
    %v104 = vmul.f32 %v88, %v102
    %v105 = vmul.f32 %v89, %v103
    %v106 = vmul.f32 %v42, 0.25
    %v107 = vmul.f32 %v43, 0.25
    %v108 = vmul.f32 %v94, 0.75
    %v109 = vmul.f32 %v95, 0.75
    %v110 = vadd.f32 %v106, %v108
    %v111 = vadd.f32 %v107, %v109
    %v112 = vmul.f32 %v110, %v104
    %v113 = vmul.f32 %v111, %v105
    %v114 = vadd.f32 %v112, %v113
    %115 = vst [vmem:[#allocation7] sm:$0xff] %v114
    // Predicated region
    $region18: #{tpu_custom_call.1} parent=1 // pred_check
      _
    $region19: #{tpu_custom_call.1} parent=1 // pred_check_branch
      %117 = sbr.rel (0) target = $region21
    $region20: #{tpu_custom_call.1} parent=1 // pred_region
      %s119 = ssub.s32 128, 128
      %120 = vsyncadd [#allocation4], %s119
      %s122 = sshll.u32 [#allocation7], 4
      %s123 = int_to_ptr.vmem [resolvable:$true] %s122
      %125 = dma.vmem_to_hbm [thread:$0]  %s123, 128, %s2, [#allocation4]
    $region21: #{tpu_custom_call.1} parent=1 // pred_fallthru
      _
    // Predicated region
    $region22: #{tpu_custom_call.1} parent=1 // pred_check
      _
    $region23: #{tpu_custom_call.1} parent=1 // pred_check_branch
      %127 = sbr.rel (0) target = $region25
    $region24: #{tpu_custom_call.1} parent=1 // pred_region
      %128 = dma.done [#allocation4], 128
    $region25: #{tpu_custom_call.1} parent=1 // pred_fallthru
      _
    %129 = vsyncpa [#allocation3], 1
    %130 = vsyncpa [#allocation6], 1
    %131 = vsyncpa [#allocation4], 1

</llo_original>
